<compile_context>
chip_gen: v5e
topology: v5e:2x2
jax: 0.10.0
libtpu: 0.0.40
codegen_flags: <defaults>
</compile_context>

<pallas_src>
import numpy as np
import jax
import jax.numpy as jnp
from jax import lax
from jax.experimental import pallas as pl
from jax.experimental.pallas import tpu as pltpu

BN_EPS = 1e-5
GN_EPS = 1e-5  # nn.GroupNorm default


def make_group_mask(out_features, num_groups, dtype=jnp.float32):
    """One-hot (N, G) group-membership matrix; built once on the host."""
    ch = np.arange(out_features)
    grp = np.arange(num_groups)
    m = (ch[:, None] // (out_features // num_groups)) == grp[None, :]
    return jnp.asarray(m, dtype=dtype)


def fused_kernel(x_ref, w_ref, b_ref, combo_ref, mask_ref, bconst_ref, o_ref):
    N = w_ref.shape[0]
    G = mask_ref.shape[1]
    inv_ng = 1.0 / (N // G)      # compile-time constant (channels per group)
    inv_n = 1.0 / N              # compile-time constant

    # ---- GEMM (BatchNorm + Linear bias already folded into w'/b' on the host) ----
    # Contract the K axis of the (N, K) weight directly on the MXU (no transpose).
    y = lax.dot_general(
        x_ref[...], w_ref[...],
        dimension_numbers=(((1,), (1,)), ((), ())),
        preferred_element_type=jnp.float32,
    ) + b_ref[...]                                               # (TB, N)

    # ---- GELU (tanh approximation, matching the CUDA kernel) ----
    g = 0.5 * y * (1.0 + jnp.tanh(0.7978845608 * (y + 0.044715 * y * y * y)))

    # ---- Group statistics via two small mask matmuls (no concat, no sublane slices) ----
    # red[:, :G] = per-group sum of g
    # red[:, G:] = per-group sum of g * (gamma - group_mean(gamma))  (gamma pre-centered on host)
    red = jnp.dot(g, combo_ref[...], preferred_element_type=jnp.float32)      # (TB, 2G)
    gsq = jnp.dot(g * g, mask_ref[...], preferred_element_type=jnp.float32)   # (TB, G)

    gsum = red[:, :G]
    gwc = red[:, G:]

    mu = gsum * inv_ng                                  # per-group mean
    var = jnp.maximum(gsq * inv_ng - mu * mu, 0.0)      # biased var, clamped >= 0
    inv_sigma = lax.rsqrt(var + GN_EPS)                 # (TB, G)

    # mean_N(groupnorm(g)*gamma + beta) = (1/N) * sum_g gwc_g * inv_sigma_g + sum(beta)/N
    total = jnp.sum(gwc * inv_sigma, axis=1, keepdims=True)       # (TB, 1)
    m = total * inv_n + bconst_ref[0]                             # SMEM scalar = sum(beta)/N

    # ---- ReLU ----
    o_ref[...] = jnp.maximum(m, 0.0)


def _pick_batch_tile(B):
    """Multiple-of-8 tile, <= 256 rows, aiming for >= 2 grid blocks (v7x has 2 TensorCores)."""
    if B <= 8:
        return B
    target = min(256, ((((B + 1) // 2) + 7) // 8) * 8)
    for tb in range(target, 7, -8):
        if B % tb == 0:
            return tb
    return B  # fallback: one full-batch block (block dim == array dim is always legal)


def fused_forward(x, weight, bias, running_mean, running_var, gn_weight, gn_bias,
                  num_groups, block_b=None, gemm_dtype=jnp.float32):
    x = jnp.asarray(x, jnp.float32)
    weight = jnp.asarray(weight, jnp.float32)
    B, K = x.shape
    N = weight.shape[0]
    G = num_groups
    assert N % G == 0
    Ng = N // G

    # ---- host-side constant folding (inference) ----
    inv_std = lax.rsqrt(jnp.asarray(running_var, jnp.float32) + BN_EPS)            # (N,)
    w_fold = weight * inv_std[:, None]                                             # (N, K)
    b_fold = ((jnp.asarray(bias, jnp.float32)
               - jnp.asarray(running_mean, jnp.float32)) * inv_std).reshape(1, N)  # (1, N)

    gamma = jnp.asarray(gn_weight, jnp.float32)
    mask = make_group_mask(N, G)                                                   # (N, G)
    gammabar = gamma.reshape(G, Ng).mean(axis=1)                                   # (G,)
    centered = gamma - jnp.repeat(gammabar, Ng)                                    # (N,)
    combo = jnp.concatenate([mask, mask * centered[:, None]], axis=1)              # (N, 2G)
    bconst = (jnp.sum(jnp.asarray(gn_bias, jnp.float32)) / N).reshape(1)           # (1,) SMEM

    # Optional bf16 GEMM (v6e/v7x native MXU rate, halves x/weight DMA). Stats stay f32.
    if gemm_dtype != jnp.float32:
        x_in = x.astype(gemm_dtype)
        w_in = w_fold.astype(gemm_dtype)
    else:
        x_in, w_in = x, w_fold

    # ---- batch tiling ----
    if block_b is not None:
        TB = block_b
        assert B % TB == 0, "batch must be divisible by the batch tile"
        assert TB % 8 == 0 or TB == B, "batch tile must be a sublane multiple (or the full batch)"
    else:
        TB = _pick_batch_tile(B)
    grid = (B // TB,)

    in_specs = [
        pl.BlockSpec((TB, K), lambda i: (i, 0)),                    # x tile
        pl.BlockSpec((N, K), lambda i: (0, 0)),                     # folded weight (grid-invariant)
        pl.BlockSpec((1, N), lambda i: (0, 0)),                     # folded bias
        pl.BlockSpec((N, 2 * G), lambda i: (0, 0)),                 # [mask | mask*centered_gamma]
        pl.BlockSpec((N, G), lambda i: (0, 0)),                     # group one-hot mask
        pl.BlockSpec(memory_space=pltpu.MemorySpace.SMEM),          # sum(beta)/N scalar
    ]
    out_specs = pl.BlockSpec((TB, 1), lambda i: (i, 0))

    return pl.pallas_call(
        fused_kernel,
        grid=grid,
        in_specs=in_specs,
        out_specs=out_specs,
        out_shape=jax.ShapeDtypeStruct((B, 1), jnp.float32),
        compiler_params=pltpu.CompilerParams(dimension_semantics=("parallel",)),
    )(x_in, w_in, b_fold, combo, mask, bconst)


def reference_forward(x, weight, bias, running_mean, running_var, gn_weight, gn_bias, num_groups):
    y = x @ weight.T + bias
    z = (y - running_mean) / jnp.sqrt(running_var + BN_EPS)
    g = 0.5 * z * (1.0 + jnp.tanh(0.7978845608 * (z + 0.044715 * z ** 3)))
    B, N = g.shape
    gr = g.reshape(B, num_groups, N // num_groups)
    mean = gr.mean(axis=-1, keepdims=True)
    var = gr.var(axis=-1, keepdims=True)
    gn = ((gr - mean) / jnp.sqrt(var + GN_EPS)).reshape(B, N)
    gn = gn * gn_weight + gn_bias
    return jnp.maximum(gn.mean(axis=1, keepdims=True), 0.0)


if __name__ == "__main__":
    B, in_features, out_features, num_groups = 8, 32, 128, 8

    key = jax.random.PRNGKey(0)
    k1, k2, k3, k4, k5, k6, k7 = jax.random.split(key, 7)
    x = jax.random.normal(k1, (B, in_features), dtype=jnp.float32)
    weight = jax.random.normal(k2, (out_features, in_features), dtype=jnp.float32)
    bias = jax.random.normal(k3, (out_features,), dtype=jnp.float32)
    # Non-trivial running stats / affine params to exercise every fused stage.
    running_mean = 0.1 * jax.random.normal(k4, (out_features,), dtype=jnp.float32)
    running_var = jax.random.uniform(k5, (out_features,), jnp.float32, minval=0.5, maxval=1.5)
    gn_weight = jax.random.normal(k6, (out_features,), dtype=jnp.float32)
    gn_bias = jax.random.normal(k7, (out_features,), dtype=jnp.float32)

    out = fused_forward(x, weight, bias, running_mean, running_var,
                        gn_weight, gn_bias, num_groups)
    out = jax.block_until_ready(out)

    ref = reference_forward(x, weight, bias, running_mean, running_var,
                            gn_weight, gn_bias, num_groups)
    assert out.shape == (B, 1)
    assert jnp.allclose(out, ref, atol=1e-3, rtol=1e-3), (out, ref)
    print("KERNEL_OK")
</pallas_src>

<mosaic_0001>
module attributes {stable_mosaic.version = 11 : i64} {
  func.func @fused_kernel(%arg0: i32, %arg1: memref<8x32xf32, #tpu.memory_space<vmem>>, %arg2: memref<128x32xf32, #tpu.memory_space<vmem>>, %arg3: memref<1x128xf32, #tpu.memory_space<vmem>>, %arg4: memref<128x16xf32, #tpu.memory_space<vmem>>, %arg5: memref<128x8xf32, #tpu.memory_space<vmem>>, %arg6: memref<1xf32, #tpu.memory_space<smem>>, %arg7: memref<8x1xf32, #tpu.memory_space<vmem>>) attributes {dimension_semantics = [#tpu.dimension_semantics<parallel>], iteration_bounds = array<i64: 1>, scalar_prefetch = 0 : i64, scratch_operands = 0 : i64, tpu.core_type = #tpu.core_type<tc>, window_params = [{transform_indices = @transform_0, window_bounds = array<i64: 8, 32>}, {pipeline_mode = #tpu.pipeline_mode<synchronous>, transform_indices = @transform_1, window_bounds = array<i64: 128, 32>}, {pipeline_mode = #tpu.pipeline_mode<synchronous>, transform_indices = @transform_2, window_bounds = array<i64: 1, 128>}, {pipeline_mode = #tpu.pipeline_mode<synchronous>, transform_indices = @transform_3, window_bounds = array<i64: 128, 16>}, {pipeline_mode = #tpu.pipeline_mode<synchronous>, transform_indices = @transform_4, window_bounds = array<i64: 128, 8>}, {transform_indices = @transform_5, window_bounds = array<i64: 1>}, {transform_indices = @transform_6, window_bounds = array<i64: 8, 1>}]} {
    %c0 = arith.constant 0 : index
    %c0_0 = arith.constant 0 : index
    %0 = vector.load %arg1[%c0, %c0_0] : memref<8x32xf32, #tpu.memory_space<vmem>>, vector<8x32xf32>
    %c0_1 = arith.constant 0 : index
    %c0_2 = arith.constant 0 : index
    %1 = vector.load %arg2[%c0_1, %c0_2] : memref<128x32xf32, #tpu.memory_space<vmem>>, vector<128x32xf32>
    %cst = arith.constant dense<0.000000e+00> : vector<8x128xf32>
    %2 = tpu.matmul %0, %1, %cst {dimension_numbers = #tpu.dot_dimension_numbers<[1], [1], [0], [0], [0, 0, 1, 0], [], []>} : vector<8x32xf32>, vector<128x32xf32>, vector<8x128xf32> -> vector<8x128xf32>
    %c0_3 = arith.constant 0 : index
    %c0_4 = arith.constant 0 : index
    %3 = vector.load %arg3[%c0_3, %c0_4] : memref<1x128xf32, #tpu.memory_space<vmem>>, vector<1x128xf32>
    %4 = vector.broadcast %3 : vector<1x128xf32> to vector<8x128xf32>
    %5 = arith.addf %2, %4 : vector<8x128xf32>
    %cst_5 = arith.constant 5.000000e-01 : f32
    %6 = vector.broadcast %cst_5 : f32 to vector<8x128xf32>
    %7 = arith.mulf %6, %5 : vector<8x128xf32>
    %cst_6 = arith.constant 4.471500e-02 : f32
    %8 = vector.broadcast %cst_6 : f32 to vector<8x128xf32>
    %9 = arith.mulf %8, %5 : vector<8x128xf32>
    %10 = arith.mulf %9, %5 : vector<8x128xf32>
    %11 = arith.mulf %10, %5 : vector<8x128xf32>
    %12 = arith.addf %5, %11 : vector<8x128xf32>
    %cst_7 = arith.constant 0.797884583 : f32
    %13 = vector.broadcast %cst_7 : f32 to vector<8x128xf32>
    %14 = arith.mulf %13, %12 : vector<8x128xf32>
    %15 = math.tanh %14 : vector<8x128xf32>
    %cst_8 = arith.constant 1.000000e+00 : f32
    %16 = vector.broadcast %cst_8 : f32 to vector<8x128xf32>
    %17 = arith.addf %16, %15 : vector<8x128xf32>
    %18 = arith.mulf %7, %17 : vector<8x128xf32>
    %c0_9 = arith.constant 0 : index
    %c0_10 = arith.constant 0 : index
    %19 = vector.load %arg4[%c0_9, %c0_10] : memref<128x16xf32, #tpu.memory_space<vmem>>, vector<128x16xf32>
    %cst_11 = arith.constant dense<0.000000e+00> : vector<8x16xf32>
    %20 = tpu.matmul %18, %19, %cst_11 {dimension_numbers = #tpu.dot_dimension_numbers<[1], [0], [0], [1], [0, 0, 1, 1], [], []>} : vector<8x128xf32>, vector<128x16xf32>, vector<8x16xf32> -> vector<8x16xf32>
    %21 = arith.mulf %18, %18 : vector<8x128xf32>
    %c0_12 = arith.constant 0 : index
    %c0_13 = arith.constant 0 : index
    %22 = vector.load %arg5[%c0_12, %c0_13] : memref<128x8xf32, #tpu.memory_space<vmem>>, vector<128x8xf32>
    %cst_14 = arith.constant dense<0.000000e+00> : vector<8x8xf32>
    %23 = tpu.matmul %21, %22, %cst_14 {dimension_numbers = #tpu.dot_dimension_numbers<[1], [0], [0], [1], [0, 0, 1, 1], [], []>} : vector<8x128xf32>, vector<128x8xf32>, vector<8x8xf32> -> vector<8x8xf32>
    %24 = vector.extract_strided_slice %20 {offsets = [0, 0], sizes = [8, 8], strides = [1, 1]} : vector<8x16xf32> to vector<8x8xf32>
    %25 = vector.extract_strided_slice %20 {offsets = [0, 8], sizes = [8, 8], strides = [1, 1]} : vector<8x16xf32> to vector<8x8xf32>
    %cst_15 = arith.constant 6.250000e-02 : f32
    %26 = vector.broadcast %cst_15 : f32 to vector<8x8xf32>
    %27 = arith.mulf %24, %26 : vector<8x8xf32>
    %cst_16 = arith.constant 6.250000e-02 : f32
    %28 = vector.broadcast %cst_16 : f32 to vector<8x8xf32>
    %29 = arith.mulf %23, %28 : vector<8x8xf32>
    %30 = arith.mulf %27, %27 : vector<8x8xf32>
    %31 = arith.subf %29, %30 : vector<8x8xf32>
    %cst_17 = arith.constant 0.000000e+00 : f32
    %32 = vector.broadcast %cst_17 : f32 to vector<8x8xf32>
    %33 = arith.maximumf %31, %32 : vector<8x8xf32>
    %cst_18 = arith.constant 9.99999974E-6 : f32
    %34 = vector.broadcast %cst_18 : f32 to vector<8x8xf32>
    %35 = arith.addf %33, %34 : vector<8x8xf32>
    %36 = math.rsqrt %35 : vector<8x8xf32>
    %37 = arith.mulf %25, %36 : vector<8x8xf32>
    %cst_19 = arith.constant dense<0.000000e+00> : vector<8xf32>
    %38 = vector.multi_reduction <add>, %37, %cst_19 [1] : vector<8x8xf32> to vector<8xf32>
    %39 = vector.shape_cast %38 : vector<8xf32> to vector<8x1xf32>
    %cst_20 = arith.constant 7.812500e-03 : f32
    %40 = vector.broadcast %cst_20 : f32 to vector<8x1xf32>
    %41 = arith.mulf %39, %40 : vector<8x1xf32>
    %c0_21 = arith.constant 0 : index
    %42 = memref.load %arg6[%c0_21] : memref<1xf32, #tpu.memory_space<smem>>
    %43 = vector.broadcast %42 : f32 to vector<8x1xf32>
    %44 = arith.addf %41, %43 : vector<8x1xf32>
    %cst_22 = arith.constant 0.000000e+00 : f32
    %45 = vector.broadcast %cst_22 : f32 to vector<8x1xf32>
    %46 = arith.maximumf %44, %45 : vector<8x1xf32>
    %c0_23 = arith.constant 0 : index
    %c0_24 = arith.constant 0 : index
    %47 = vector.load %arg7[%c0_23, %c0_24] : memref<8x1xf32, #tpu.memory_space<vmem>>, vector<8x1xf32>
    tpu.vector_store %arg7[%c0_23, %c0_24], %46 {strides = array<i32>} : memref<8x1xf32, #tpu.memory_space<vmem>>, vector<8x1xf32>,
    return
  }
  func.func @transform_0(%arg0: i32) -> (i32, i32) {
    %c0_i32 = arith.constant 0 : i32
    %c0_i32_0 = arith.constant 0 : i32
    return %arg0, %c0_i32 : i32, i32
  }
  func.func @transform_1(%arg0: i32) -> (i32, i32) {
    %c0_i32 = arith.constant 0 : i32
    %c0_i32_0 = arith.constant 0 : i32
    %c0_i32_1 = arith.constant 0 : i32
    return %c0_i32, %c0_i32_0 : i32, i32
  }
  func.func @transform_2(%arg0: i32) -> (i32, i32) {
    %c0_i32 = arith.constant 0 : i32
    %c0_i32_0 = arith.constant 0 : i32
    %c0_i32_1 = arith.constant 0 : i32
    return %c0_i32, %c0_i32_0 : i32, i32
  }
  func.func @transform_3(%arg0: i32) -> (i32, i32) {
    %c0_i32 = arith.constant 0 : i32
    %c0_i32_0 = arith.constant 0 : i32
    %c0_i32_1 = arith.constant 0 : i32
    return %c0_i32, %c0_i32_0 : i32, i32
  }
  func.func @transform_4(%arg0: i32) -> (i32, i32) {
    %c0_i32 = arith.constant 0 : i32
    %c0_i32_0 = arith.constant 0 : i32
    %c0_i32_1 = arith.constant 0 : i32
    return %c0_i32, %c0_i32_0 : i32, i32
  }
  func.func @transform_5(%arg0: i32) -> i32 {
    %c0_i32 = arith.constant 0 : i32
    %c0_i32_0 = arith.constant 0 : i32
    return %c0_i32 : i32
  }
  func.func @transform_6(%arg0: i32) -> (i32, i32) {
    %c0_i32 = arith.constant 0 : i32
    %c0_i32_0 = arith.constant 0 : i32
    return %arg0, %c0_i32 : i32, i32
  }
}

</mosaic_0001>

<llo_original>
// kernel: tpu_custom_call.1
$region0: #{tpu_custom_call.1}
  #allocation0 [shape = 'u32[]', space=smem, size = 0x4, offset = 0x4, fixed_abs, tag = 'smem constant byte address 0x4 - core index']
  #allocation1 [shape = 'u32[72,128]{1,0:T(1,128)}', space=vmem, size = 0x9000, scoped, tag = 'internal scratch']
  #allocation2 [shape = 'f32[1]{0:T(128)S(6)}', space=smem, size = 0x200, scoped, tag = 'scoped memory for tpu_custom_call.1']
  %s0 = inlined_call_operand.vmem [shape: f32[8,32], index: 0, kind: input, shape index: {}]
  %s1 = inlined_call_operand.vmem [shape: f32[128,32], index: 1, kind: input, shape index: {}]
  %s2 = inlined_call_operand.vmem [shape: f32[1,128], index: 2, kind: input, shape index: {}]
  %s3 = inlined_call_operand.vmem [shape: f32[128,16], index: 3, kind: input, shape index: {}]
  %s4 = inlined_call_operand.vmem [shape: f32[128,8], index: 4, kind: input, shape index: {}]
  %s5 = inlined_call_operand.<no memory space> [shape: f32[1], index: 5, kind: input, shape index: {}]
  %s6 = inlined_call_operand.vmem [shape: f32[8,1], index: 6, kind: output, shape index: {}]
  %s7 = sld [smem:[#allocation0]]
  $region34: #{tpu_custom_call.1} parent=0
    _
  %s9 = ssub.s32 1, %s7
  %s10 = scalar_select 0, %s9, %s7
  %11 = sst [smem:[#allocation2]] %s5
  // Predicated region
  $region2: #{tpu_custom_call.1} parent=0 // pred_check
    _
  $region3: #{tpu_custom_call.1} parent=0 // pred_check_branch
    %13 = sbr.rel (0) target = $region5
  $region4: #{tpu_custom_call.1} parent=0 // pred_region
    _
  $region5: #{tpu_custom_call.1} parent=0 // pred_fallthru
    _
  // Predicated region
  $region6: #{tpu_custom_call.1} parent=0 // pred_check
    _
  $region7: #{tpu_custom_call.1} parent=0 // pred_check_branch
    %15 = sbr.rel (0) target = $region9
  $region8: #{tpu_custom_call.1} parent=0 // pred_region
    _
  $region9: #{tpu_custom_call.1} parent=0 // pred_fallthru
    _
  // Predicated region
  $region10: #{tpu_custom_call.1} parent=0 // pred_check
    _
  $region11: #{tpu_custom_call.1} parent=0 // pred_check_branch
    %17 = sbr.rel (0) target = $region13
  $region12: #{tpu_custom_call.1} parent=0 // pred_region
    _
  $region13: #{tpu_custom_call.1} parent=0 // pred_fallthru
    _
  // Predicated region
  $region14: #{tpu_custom_call.1} parent=0 // pred_check
    _
  $region15: #{tpu_custom_call.1} parent=0 // pred_check_branch
    %19 = sbr.rel (0) target = $region17
  $region16: #{tpu_custom_call.1} parent=0 // pred_region
    _
  $region17: #{tpu_custom_call.1} parent=0 // pred_fallthru
    _
  // Predicated region
  $region18: #{tpu_custom_call.1} parent=0 // pred_check
    _
  $region19: #{tpu_custom_call.1} parent=0 // pred_check_branch
    %21 = sbr.rel (0) target = $region21
  $region20: #{tpu_custom_call.1} parent=0 // pred_region
    _
  $region21: #{tpu_custom_call.1} parent=0 // pred_fallthru
    _
  // Predicated region
  $region22: #{tpu_custom_call.1} parent=0 // pred_check
    _
  $region23: #{tpu_custom_call.1} parent=0 // pred_check_branch
    %23 = sbr.rel (0) target = $region25
  $region24: #{tpu_custom_call.1} parent=0 // pred_region
    _
  $region25: #{tpu_custom_call.1} parent=0 // pred_fallthru
    _
  %v24 = vld [vmem:[%s0] sm:$0xff]
  %v25 = vld [vmem:[%s1] sm:$0xff]
  %v26 = vld [vmem:[%s1 + $0x8] sm:$0xff]
  %v27 = vld [vmem:[%s1 + $0x10] sm:$0xff]
  %v28 = vld [vmem:[%s1 + $0x18] sm:$0xff]
  %v29 = vld [vmem:[%s1 + $0x20] sm:$0xff]
  %v30 = vld [vmem:[%s1 + $0x28] sm:$0xff]
  %v31 = vld [vmem:[%s1 + $0x30] sm:$0xff]
  %v32 = vld [vmem:[%s1 + $0x38] sm:$0xff]
  %v33 = vld [vmem:[%s1 + $0x40] sm:$0xff]
  %v34 = vld [vmem:[%s1 + $0x48] sm:$0xff]
  %v35 = vld [vmem:[%s1 + $0x50] sm:$0xff]
  %v36 = vld [vmem:[%s1 + $0x58] sm:$0xff]
  %v37 = vld [vmem:[%s1 + $0x60] sm:$0xff]
  %v38 = vld [vmem:[%s1 + $0x68] sm:$0xff]
  %v39 = vld [vmem:[%s1 + $0x70] sm:$0xff]
  %v40 = vld [vmem:[%s1 + $0x78] sm:$0xff]
  %v41 = vld [vmem:[%s2] sm:$0x1]
  %v43 = vperm.slane %v41, 0
  %vm45 = vcmask 261120
  %v47 = vsel %vm45, %v24, 0
  %v50 = vsel %vm45, %v25, 0
  %v53 = vsel %vm45, %v26, 0
  %v56 = vsel %vm45, %v27, 0
  %v59 = vsel %vm45, %v28, 0
  %v62 = vsel %vm45, %v29, 0
  %v65 = vsel %vm45, %v30, 0
  %v68 = vsel %vm45, %v31, 0
  %v71 = vsel %vm45, %v32, 0
  %v74 = vsel %vm45, %v33, 0
  %v77 = vsel %vm45, %v34, 0
  %v80 = vsel %vm45, %v35, 0
  %v83 = vsel %vm45, %v36, 0
  %v86 = vsel %vm45, %v37, 0
  %v89 = vsel %vm45, %v38, 0
  %v92 = vsel %vm45, %v39, 0
  %v95 = vsel %vm45, %v40, 0
  %97 = vmatpush.xpose.msra.mxu0 %v95
  %98 = vmatpush.xpose.msra.mxu0 %v92
  %99 = vmatpush.xpose.msra.mxu0 %v89
  %100 = vmatpush.xpose.msra.mxu0 %v86
  %101 = vmatpush.xpose.msra.mxu0 %v83
  %102 = vmatpush.xpose.msra.mxu0 %v80
  %103 = vmatpush.xpose.msra.mxu0 %v77
  %104 = vmatpush.xpose.msra.mxu0 %v74
  %105 = vmatpush.xpose.msra.mxu0 %v71
  %106 = vmatpush.xpose.msra.mxu0 %v68
  %107 = vmatpush.xpose.msra.mxu0 %v65
  %108 = vmatpush.xpose.msra.mxu0 %v62
  %109 = vmatpush.xpose.msra.mxu0 %v59
  %110 = vmatpush.xpose.msra.mxu0 %v56
  %111 = vmatpush.xpose.msra.mxu0 %v53
  %112 = vmatpush.xpose.msra.mxu0 %v50
  %113 = vmatmul.f32.gmra.mxu0 %v47
  %v114 = vpop.f32.mrf.mxu0
  %v115 = vadd.f32 %v43, %v114
  %116 = vdwg.mxu0
  %v117 = vmul.f32 %v115, 0.5
  %v118 = vmul.f32 %v115, 0.044715
  %v119 = vmul.f32 %v118, %v115
  %v120 = vmul.f32 %v119, %v115
  %v121 = vadd.f32 %v115, %v120
  %v122 = vmul.f32 %v121, 0.7978846
  %v123 = vtanh.pop %v122
  %v124 = vadd.f32 %v123, 1.0
  %v125 = vmul.f32 %v117, %v124
  %v126 = vld [vmem:[%s3] sm:$0xff]
  %v127 = vld [vmem:[%s3 + $0x8] sm:$0xff]
  %v128 = vld [vmem:[%s3 + $0x10] sm:$0xff]
  %v129 = vld [vmem:[%s3 + $0x18] sm:$0xff]
  %v130 = vld [vmem:[%s3 + $0x20] sm:$0xff]
  %v131 = vld [vmem:[%s3 + $0x28] sm:$0xff]
  %v132 = vld [vmem:[%s3 + $0x30] sm:$0xff]
  %v133 = vld [vmem:[%s3 + $0x38] sm:$0xff]
  %v134 = vld [vmem:[%s3 + $0x40] sm:$0xff]
  %v135 = vld [vmem:[%s3 + $0x48] sm:$0xff]
  %v136 = vld [vmem:[%s3 + $0x50] sm:$0xff]
  %v137 = vld [vmem:[%s3 + $0x58] sm:$0xff]
  %v138 = vld [vmem:[%s3 + $0x60] sm:$0xff]
  %v139 = vld [vmem:[%s3 + $0x68] sm:$0xff]
  %v140 = vld [vmem:[%s3 + $0x70] sm:$0xff]
  %v141 = vld [vmem:[%s3 + $0x78] sm:$0xff]
  %142 = vmatpush.msra.mxu0 %v141
  %143 = vmatpush.msra.mxu0 %v140
  %144 = vmatpush.msra.mxu0 %v139
  %145 = vmatpush.msra.mxu0 %v138
  %146 = vmatpush.msra.mxu0 %v137
  %147 = vmatpush.msra.mxu0 %v136
  %148 = vmatpush.msra.mxu0 %v135
  %149 = vmatpush.msra.mxu0 %v134
  %150 = vmatpush.msra.mxu0 %v133
  %151 = vmatpush.msra.mxu0 %v132
  %152 = vmatpush.msra.mxu0 %v131
  %153 = vmatpush.msra.mxu0 %v130
  %154 = vmatpush.msra.mxu0 %v129
  %155 = vmatpush.msra.mxu0 %v128
  %156 = vmatpush.msra.mxu0 %v127
  %157 = vmatpush.msra.mxu0 %v126
  %158 = vmatmul.f32.gmra.mxu0 %v125
  %v159 = vpop.f32.mrf.mxu0
  %v160 = vadd.f32 0.0, %v159
  %161 = vdwg.mxu0
  %v162 = vmul.f32 %v125, %v125
  %v163 = vld [vmem:[%s4] sm:$0xff]
  %v164 = vld [vmem:[%s4 + $0x8] sm:$0xff]
  %v165 = vld [vmem:[%s4 + $0x10] sm:$0xff]
  %v166 = vld [vmem:[%s4 + $0x18] sm:$0xff]
  %v167 = vld [vmem:[%s4 + $0x20] sm:$0xff]
  %v168 = vld [vmem:[%s4 + $0x28] sm:$0xff]
  %v169 = vld [vmem:[%s4 + $0x30] sm:$0xff]
  %v170 = vld [vmem:[%s4 + $0x38] sm:$0xff]
  %v171 = vld [vmem:[%s4 + $0x40] sm:$0xff]
  %v172 = vld [vmem:[%s4 + $0x48] sm:$0xff]
  %v173 = vld [vmem:[%s4 + $0x50] sm:$0xff]
  %v174 = vld [vmem:[%s4 + $0x58] sm:$0xff]
  %v175 = vld [vmem:[%s4 + $0x60] sm:$0xff]
  %v176 = vld [vmem:[%s4 + $0x68] sm:$0xff]
  %v177 = vld [vmem:[%s4 + $0x70] sm:$0xff]
  %v178 = vld [vmem:[%s4 + $0x78] sm:$0xff]
  %179 = vmatpush.msra.mxu0 %v178
  %180 = vmatpush.msra.mxu0 %v177
  %181 = vmatpush.msra.mxu0 %v176
  %182 = vmatpush.msra.mxu0 %v175
  %183 = vmatpush.msra.mxu0 %v174
  %184 = vmatpush.msra.mxu0 %v173
  %185 = vmatpush.msra.mxu0 %v172
  %186 = vmatpush.msra.mxu0 %v171
  %187 = vmatpush.msra.mxu0 %v170
  %188 = vmatpush.msra.mxu0 %v169
  %189 = vmatpush.msra.mxu0 %v168
  %190 = vmatpush.msra.mxu0 %v167
  %191 = vmatpush.msra.mxu0 %v166
  %192 = vmatpush.msra.mxu0 %v165
  %193 = vmatpush.msra.mxu0 %v164
  %194 = vmatpush.msra.mxu0 %v163
  %195 = vmatmul.f32.gmra.mxu0 %v162
  %v196 = vpop.f32.mrf.mxu0
  %v197 = vadd.f32 0.0, %v196
  %198 = vdwg.mxu0
  %v199 = vmul.f32 %v160, 0.0625
  %v200 = vmul.f32 %v197, 0.0625
  %v201 = vmul.f32 %v199, %v199
  %v202 = vsub.f32 %v200, %v201
  %v203 = vmax.f32 %v202, 0.0
  %v204 = vadd.f32 %v203, 1e-05
  %v205 = vrsqrt.pop %v204
  %v206 = vmul.f32 %v205, %v204
  %v207 = vmul.f32 %v206, %v205
  %v208 = vmul.f32 0.5, %v207
  %v209 = vsub.f32 1.5, %v208
  %v210 = vmul.f32 %v205, %v209
  %vm211 = vweird.f32 %v204
  %vm212 = vweird.f32 %v205
  %vm213 = vmor %vm211, %vm212
  %v214 = vsel %vm213, %v205, %v210
  %216 = vrot.lane.b32.xlu0 %v214, 8
  %v217 = vpop.permute.xlu0 %216
  %v219 = vmul.f32 %v160, %v217
  %221 = vrot.lane.b32.xlu0 %v219, 120
  %v222 = vpop.permute.xlu0 %221
  %vm224 = vcmask 64512
  %v225 = vsel %vm224, %v222, 0.0
  %226 = vadd.xlane.f32.xlu0 %v225
  %v227 = vpop.xlane.xlu0 %226
  %v228 = vmul.f32 %v227, 0.0078125
  %s229 = sld [smem:[#allocation2]]
  %v230 = vstv %s229
  %v231 = vadd.f32 %v228, %v230
  %v232 = vmax.f32 %v231, 0.0
  %vm233 = vcmask 7168
  %234 = vst.msk [vmem:[%s6] sm:$0xff] %vm233, %v232
  // Predicated region
  $region26: #{tpu_custom_call.1} parent=0 // pred_check
    _
  $region27: #{tpu_custom_call.1} parent=0 // pred_check_branch
    %236 = sbr.rel (0) target = $region29
  $region28: #{tpu_custom_call.1} parent=0 // pred_region
    _
  $region29: #{tpu_custom_call.1} parent=0 // pred_fallthru
    _
  // Predicated region
  $region30: #{tpu_custom_call.1} parent=0 // pred_check
    _
  $region31: #{tpu_custom_call.1} parent=0 // pred_check_branch
    %238 = sbr.rel (0) target = $region33
  $region32: #{tpu_custom_call.1} parent=0 // pred_region
    _
  $region33: #{tpu_custom_call.1} parent=0 // pred_fallthru
    _

</llo_original>
